<compile_context>
chip_gen: v6e
topology: v6e:2x2x1
jax: 0.10.0
libtpu: 0.0.40
codegen_flags: <defaults>
</compile_context>

<pallas_src>
import jax
import jax.numpy as jnp
from jax.experimental import pallas as pl
from jax.experimental.pallas import tpu as pltpu

INPUT_SIZE = 5
HIDDEN = [128, 128]
OUTPUT_SIZE = 5
MAX_BLOCK_B = 2048   # multiple of 256 (and of 128 for v5e)


def mlp_kernel(x_ref, w0_ref, b0_ref, w1_ref, b1_ref, w2_ref, b2_ref,
               w3_ref, b3_ref, o_ref):
    # x arrives at its native narrow width; bf16 cast is done here.
    # 4 MXU matmuls (bf16 operands, f32 accumulate) + VPU bias/ReLU in f32.
    x = x_ref[...].astype(jnp.bfloat16)
    h = jnp.dot(x, w0_ref[...], preferred_element_type=jnp.float32)
    h = jnp.maximum(h + b0_ref[...], 0.0).astype(jnp.bfloat16)
    h = jnp.dot(h, w1_ref[...], preferred_element_type=jnp.float32)
    h = jnp.maximum(h + b1_ref[...], 0.0).astype(jnp.bfloat16)
    h = jnp.dot(h, w2_ref[...], preferred_element_type=jnp.float32)
    h = jnp.maximum(h + b2_ref[...], 0.0).astype(jnp.bfloat16)
    out = jnp.dot(h, w3_ref[...], preferred_element_type=jnp.float32) + b3_ref[...]
    o_ref[...] = out.astype(o_ref.dtype)


def _choose_block_b(B: int) -> int:
    """Whole batch for small B; for large B, big tiles but >= 2 grid steps."""
    if B <= 256:
        return B
    half = -(-B // 2)                      # cdiv(B, 2): guarantees grid >= 2
    half = ((half + 255) // 256) * 256     # keep a multiple of 256 (128 on v5e)
    return min(MAX_BLOCK_B, half)


@jax.jit
def imitation_model_forward(x, prepared_params):
    """x: (B, 5) float32, prepared_params from prepare_params() -> (B, 5) float32."""
    B, in_dim = x.shape
    (w0, b0), (w1, b1), (w2, b2), (w3, b3) = prepared_params
    out_dim = w3.shape[1]

    block_b = _choose_block_b(B)
    grid = (pl.cdiv(B, block_b),)

    # Weights/biases: whole array resident in VMEM, no per-step double-buffer.
    resident = pl.BlockSpec(memory_space=pltpu.MemorySpace.VMEM)

    return pl.pallas_call(
        mlp_kernel,
        out_shape=jax.ShapeDtypeStruct((B, out_dim), jnp.float32),
        grid=grid,
        in_specs=[
            pl.BlockSpec((block_b, in_dim), lambda i: (i, 0)),  # x tile, narrow
            resident, resident,   # w0, b0
            resident, resident,   # w1, b1
            resident, resident,   # w2, b2
            resident, resident,   # w3, b3
        ],
        out_specs=pl.BlockSpec((block_b, out_dim), lambda i: (i, 0)),  # narrow out
        compiler_params=pltpu.CompilerParams(
            dimension_semantics=("parallel",)),
    )(x, w0, b0, w1, b1, w2, b2, w3, b3)


def init_params(key):
    """Deterministic synthetic init mimicking nn.Linear's U(-1/sqrt(fan_in), .)."""
    dims = [INPUT_SIZE, HIDDEN[0], HIDDEN[1], HIDDEN[1], OUTPUT_SIZE]
    params = []
    for fan_in, fan_out in zip(dims[:-1], dims[1:]):
        key, kw, kb = jax.random.split(key, 3)
        bound = 1.0 / jnp.sqrt(fan_in)
        w = jax.random.uniform(kw, (fan_in, fan_out), jnp.float32, -bound, bound)
        # biases kept 2D (1, N) for TPU-friendly layout; broadcasts over batch
        b = jax.random.uniform(kb, (1, fan_out), jnp.float32, -bound, bound)
        params.append((w, b))
    return params


def prepare_params(params):
    """One-time weight prep (outside the jitted forward): bf16 weights, f32 biases."""
    return tuple((w.astype(jnp.bfloat16), b.astype(jnp.float32)) for w, b in params)


def reference_forward(x, params):
    h = x
    for w, b in params[:-1]:
        h = jnp.maximum(h @ w + b, 0.0)
    w, b = params[-1]
    return h @ w + b


if __name__ == "__main__":
    key = jax.random.PRNGKey(0)
    kx, kp = jax.random.split(key)
    batch = 8
    x = jax.random.normal(kx, (batch, INPUT_SIZE), jnp.float32)
    params = init_params(kp)
    prepared = prepare_params(params)   # hoisted, one-time cast

    out = imitation_model_forward(x, prepared)
    out = jax.block_until_ready(out)

    ref = reference_forward(x, params)
    assert out.shape == (batch, OUTPUT_SIZE), out.shape
    # bf16 MXU operands (f32 accumulate) => compare at bf16-level tolerance.
    assert jnp.allclose(out, ref, atol=3e-2, rtol=3e-2), "mismatch vs reference"
    print("KERNEL_OK")
</pallas_src>

<mosaic_0001>
module attributes {stable_mosaic.version = 11 : i64} {
  func.func @mlp_kernel(%arg0: i32, %arg1: memref<8x5xf32, #tpu.memory_space<vmem>>, %arg2: memref<5x128xbf16, #tpu.memory_space<vmem>>, %arg3: memref<1x128xf32, #tpu.memory_space<vmem>>, %arg4: memref<128x128xbf16, #tpu.memory_space<vmem>>, %arg5: memref<1x128xf32, #tpu.memory_space<vmem>>, %arg6: memref<128x128xbf16, #tpu.memory_space<vmem>>, %arg7: memref<1x128xf32, #tpu.memory_space<vmem>>, %arg8: memref<128x5xbf16, #tpu.memory_space<vmem>>, %arg9: memref<1x5xf32, #tpu.memory_space<vmem>>, %arg10: memref<8x5xf32, #tpu.memory_space<vmem>>) attributes {dimension_semantics = [#tpu.dimension_semantics<parallel>], iteration_bounds = array<i64: 1>, scalar_prefetch = 0 : i64, scratch_operands = 0 : i64, tpu.core_type = #tpu.core_type<tc>, window_params = [{transform_indices = @transform_0, window_bounds = array<i64: 8, 5>}, {pipeline_mode = #tpu.pipeline_mode<synchronous>, transform_indices = @transform_1, window_bounds = array<i64: 5, 128>}, {pipeline_mode = #tpu.pipeline_mode<synchronous>, transform_indices = @transform_2, window_bounds = array<i64: 1, 128>}, {pipeline_mode = #tpu.pipeline_mode<synchronous>, transform_indices = @transform_3, window_bounds = array<i64: 128, 128>}, {pipeline_mode = #tpu.pipeline_mode<synchronous>, transform_indices = @transform_4, window_bounds = array<i64: 1, 128>}, {pipeline_mode = #tpu.pipeline_mode<synchronous>, transform_indices = @transform_5, window_bounds = array<i64: 128, 128>}, {pipeline_mode = #tpu.pipeline_mode<synchronous>, transform_indices = @transform_6, window_bounds = array<i64: 1, 128>}, {pipeline_mode = #tpu.pipeline_mode<synchronous>, transform_indices = @transform_7, window_bounds = array<i64: 128, 5>}, {pipeline_mode = #tpu.pipeline_mode<synchronous>, transform_indices = @transform_8, window_bounds = array<i64: 1, 5>}, {transform_indices = @transform_9, window_bounds = array<i64: 8, 5>}]} {
    %c0 = arith.constant 0 : index
    %c0_0 = arith.constant 0 : index
    %0 = vector.load %arg1[%c0, %c0_0] : memref<8x5xf32, #tpu.memory_space<vmem>>, vector<8x5xf32>
    %1 = arith.truncf %0 : vector<8x5xf32> to vector<8x5xbf16>
    %c0_1 = arith.constant 0 : index
    %c0_2 = arith.constant 0 : index
    %2 = vector.load %arg2[%c0_1, %c0_2] : memref<5x128xbf16, #tpu.memory_space<vmem>>, vector<5x128xbf16>
    %cst = arith.constant dense<0.000000e+00> : vector<8x128xf32>
    %3 = tpu.matmul %1, %2, %cst {dimension_numbers = #tpu.dot_dimension_numbers<[1], [0], [0], [1], [0, 0, 1, 1], [], []>} : vector<8x5xbf16>, vector<5x128xbf16>, vector<8x128xf32> -> vector<8x128xf32>
    %c0_3 = arith.constant 0 : index
    %c0_4 = arith.constant 0 : index
    %4 = vector.load %arg3[%c0_3, %c0_4] : memref<1x128xf32, #tpu.memory_space<vmem>>, vector<1x128xf32>
    %5 = vector.broadcast %4 : vector<1x128xf32> to vector<8x128xf32>
    %6 = arith.addf %3, %5 : vector<8x128xf32>
    %cst_5 = arith.constant 0.000000e+00 : f32
    %7 = vector.broadcast %cst_5 : f32 to vector<8x128xf32>
    %8 = arith.maximumf %6, %7 : vector<8x128xf32>
    %9 = arith.truncf %8 : vector<8x128xf32> to vector<8x128xbf16>
    %c0_6 = arith.constant 0 : index
    %c0_7 = arith.constant 0 : index
    %10 = vector.load %arg4[%c0_6, %c0_7] : memref<128x128xbf16, #tpu.memory_space<vmem>>, vector<128x128xbf16>
    %cst_8 = arith.constant dense<0.000000e+00> : vector<8x128xf32>
    %11 = tpu.matmul %9, %10, %cst_8 {dimension_numbers = #tpu.dot_dimension_numbers<[1], [0], [0], [1], [0, 0, 1, 1], [], []>} : vector<8x128xbf16>, vector<128x128xbf16>, vector<8x128xf32> -> vector<8x128xf32>
    %c0_9 = arith.constant 0 : index
    %c0_10 = arith.constant 0 : index
    %12 = vector.load %arg5[%c0_9, %c0_10] : memref<1x128xf32, #tpu.memory_space<vmem>>, vector<1x128xf32>
    %13 = vector.broadcast %12 : vector<1x128xf32> to vector<8x128xf32>
    %14 = arith.addf %11, %13 : vector<8x128xf32>
    %cst_11 = arith.constant 0.000000e+00 : f32
    %15 = vector.broadcast %cst_11 : f32 to vector<8x128xf32>
    %16 = arith.maximumf %14, %15 : vector<8x128xf32>
    %17 = arith.truncf %16 : vector<8x128xf32> to vector<8x128xbf16>
    %c0_12 = arith.constant 0 : index
    %c0_13 = arith.constant 0 : index
    %18 = vector.load %arg6[%c0_12, %c0_13] : memref<128x128xbf16, #tpu.memory_space<vmem>>, vector<128x128xbf16>
    %cst_14 = arith.constant dense<0.000000e+00> : vector<8x128xf32>
    %19 = tpu.matmul %17, %18, %cst_14 {dimension_numbers = #tpu.dot_dimension_numbers<[1], [0], [0], [1], [0, 0, 1, 1], [], []>} : vector<8x128xbf16>, vector<128x128xbf16>, vector<8x128xf32> -> vector<8x128xf32>
    %c0_15 = arith.constant 0 : index
    %c0_16 = arith.constant 0 : index
    %20 = vector.load %arg7[%c0_15, %c0_16] : memref<1x128xf32, #tpu.memory_space<vmem>>, vector<1x128xf32>
    %21 = vector.broadcast %20 : vector<1x128xf32> to vector<8x128xf32>
    %22 = arith.addf %19, %21 : vector<8x128xf32>
    %cst_17 = arith.constant 0.000000e+00 : f32
    %23 = vector.broadcast %cst_17 : f32 to vector<8x128xf32>
    %24 = arith.maximumf %22, %23 : vector<8x128xf32>
    %25 = arith.truncf %24 : vector<8x128xf32> to vector<8x128xbf16>
    %c0_18 = arith.constant 0 : index
    %c0_19 = arith.constant 0 : index
    %26 = vector.load %arg8[%c0_18, %c0_19] : memref<128x5xbf16, #tpu.memory_space<vmem>>, vector<128x5xbf16>
    %cst_20 = arith.constant dense<0.000000e+00> : vector<8x5xf32>
    %27 = tpu.matmul %25, %26, %cst_20 {dimension_numbers = #tpu.dot_dimension_numbers<[1], [0], [0], [1], [0, 0, 1, 1], [], []>} : vector<8x128xbf16>, vector<128x5xbf16>, vector<8x5xf32> -> vector<8x5xf32>
    %c0_21 = arith.constant 0 : index
    %c0_22 = arith.constant 0 : index
    %28 = vector.load %arg9[%c0_21, %c0_22] : memref<1x5xf32, #tpu.memory_space<vmem>>, vector<1x5xf32>
    %29 = vector.broadcast %28 : vector<1x5xf32> to vector<8x5xf32>
    %30 = arith.addf %27, %29 : vector<8x5xf32>
    %c0_23 = arith.constant 0 : index
    %c0_24 = arith.constant 0 : index
    %31 = vector.load %arg10[%c0_23, %c0_24] : memref<8x5xf32, #tpu.memory_space<vmem>>, vector<8x5xf32>
    tpu.vector_store %arg10[%c0_23, %c0_24], %30 {strides = array<i32>} : memref<8x5xf32, #tpu.memory_space<vmem>>, vector<8x5xf32>,
    return
  }
  func.func @transform_0(%arg0: i32) -> (i32, i32) {
    %c0_i32 = arith.constant 0 : i32
    %c0_i32_0 = arith.constant 0 : i32
    return %arg0, %c0_i32 : i32, i32
  }
  func.func @transform_1(%arg0: i32) -> (i32, i32) {
    %c0_i32 = arith.constant 0 : i32
    %c0_i32_0 = arith.constant 0 : i32
    %c0_i32_1 = arith.constant 0 : i32
    return %c0_i32, %c0_i32_0 : i32, i32
  }
  func.func @transform_2(%arg0: i32) -> (i32, i32) {
    %c0_i32 = arith.constant 0 : i32
    %c0_i32_0 = arith.constant 0 : i32
    %c0_i32_1 = arith.constant 0 : i32
    return %c0_i32, %c0_i32_0 : i32, i32
  }
  func.func @transform_3(%arg0: i32) -> (i32, i32) {
    %c0_i32 = arith.constant 0 : i32
    %c0_i32_0 = arith.constant 0 : i32
    %c0_i32_1 = arith.constant 0 : i32
    return %c0_i32, %c0_i32_0 : i32, i32
  }
  func.func @transform_4(%arg0: i32) -> (i32, i32) {
    %c0_i32 = arith.constant 0 : i32
    %c0_i32_0 = arith.constant 0 : i32
    %c0_i32_1 = arith.constant 0 : i32
    return %c0_i32, %c0_i32_0 : i32, i32
  }
  func.func @transform_5(%arg0: i32) -> (i32, i32) {
    %c0_i32 = arith.constant 0 : i32
    %c0_i32_0 = arith.constant 0 : i32
    %c0_i32_1 = arith.constant 0 : i32
    return %c0_i32, %c0_i32_0 : i32, i32
  }
  func.func @transform_6(%arg0: i32) -> (i32, i32) {
    %c0_i32 = arith.constant 0 : i32
    %c0_i32_0 = arith.constant 0 : i32
    %c0_i32_1 = arith.constant 0 : i32
    return %c0_i32, %c0_i32_0 : i32, i32
  }
  func.func @transform_7(%arg0: i32) -> (i32, i32) {
    %c0_i32 = arith.constant 0 : i32
    %c0_i32_0 = arith.constant 0 : i32
    %c0_i32_1 = arith.constant 0 : i32
    return %c0_i32, %c0_i32_0 : i32, i32
  }
  func.func @transform_8(%arg0: i32) -> (i32, i32) {
    %c0_i32 = arith.constant 0 : i32
    %c0_i32_0 = arith.constant 0 : i32
    %c0_i32_1 = arith.constant 0 : i32
    return %c0_i32, %c0_i32_0 : i32, i32
  }
  func.func @transform_9(%arg0: i32) -> (i32, i32) {
    %c0_i32 = arith.constant 0 : i32
    %c0_i32_0 = arith.constant 0 : i32
    return %arg0, %c0_i32 : i32, i32
  }
}

</mosaic_0001>

<llo_original>
// kernel: imitation_model_forward.1
$region0: #{imitation_model_forward.1}
  #allocation0 [shape = 'u32[]', space=smem, size = 0x4, offset = 0x4, fixed_abs, tag = 'smem constant byte address 0x4 - core index']
  #allocation1 [shape = 'u32[144,128]{1,0:T(1,128)}', space=vmem, size = 0x12000, scoped, tag = 'internal scratch']
  %s0 = inlined_call_operand.vmem [shape: f32[8,5], index: 0, kind: input, shape index: {}]
  %s1 = inlined_call_operand.hbm [shape: bf16[5,128], index: 1, kind: input, shape index: {}]
  %s2 = inlined_call_operand.vmem [shape: f32[1,128], index: 2, kind: input, shape index: {}]
  %s3 = inlined_call_operand.vmem [shape: bf16[128,128], index: 3, kind: input, shape index: {}]
  %s4 = inlined_call_operand.hbm [shape: f32[1,128], index: 4, kind: input, shape index: {}]
  %s5 = inlined_call_operand.hbm [shape: bf16[128,128], index: 5, kind: input, shape index: {}]
  %s6 = inlined_call_operand.vmem [shape: f32[1,128], index: 6, kind: input, shape index: {}]
  %s7 = inlined_call_operand.vmem [shape: bf16[128,5], index: 7, kind: input, shape index: {}]
  %s8 = inlined_call_operand.vmem [shape: f32[1,5], index: 8, kind: input, shape index: {}]
  %s9 = inlined_call_operand.hbm [shape: f32[8,5], index: 9, kind: output, shape index: {}]
  %s10 = sld [smem:[#allocation0]]
  $region58: #{imitation_model_forward.1} parent=0
    _
  %s12 = ssub.s32 1, %s10
  %s13 = scalar_select 0, %s12, %s10
  $region1: #{imitation_model_forward.1} parent=0
    #allocation2 [shape = 'u8[2048]{0}', space=vmem, size = 0x800, scoped, tag = 'input window, operand 1, single buffered']
    #allocation3 [shape = 's32[1]{0}', space=sflag, size = 0x4, scoped, tag = 'scoped memory for imitation_model_forward.1']
    #allocation4 [shape = 's32[1]{0}', space=sflag, size = 0x4, scoped, tag = 'scoped memory for imitation_model_forward.1']
    #allocation5 [shape = 'u8[512]{0}', space=vmem, size = 0x400, scoped, tag = 'input window, operand 4, single buffered']
    #allocation6 [shape = 's32[1]{0}', space=sflag, size = 0x4, scoped, tag = 'scoped memory for imitation_model_forward.1']
    #allocation7 [shape = 'u8[32768]{0}', space=vmem, size = 0x8000, scoped, tag = 'input window, operand 5, single buffered']
    #allocation8 [shape = 'u8[4096]{0}', space=vmem, size = 0x1000, scoped, tag = 'output window, operand 0, single buffered']
    %14 = vsyncpa [#allocation3], 0
    %15 = vsyncpa [#allocation6], 0
    %16 = vsyncpa [#allocation4], 0
    // Predicated region
    $region2: #{imitation_model_forward.1} parent=1 // pred_check
      _
    $region3: #{imitation_model_forward.1} parent=1 // pred_check_branch
      %18 = sbr.rel (0) target = $region5
    $region4: #{imitation_model_forward.1} parent=1 // pred_region
      _
    $region5: #{imitation_model_forward.1} parent=1 // pred_fallthru
      _
    // Predicated region
    $region6: #{imitation_model_forward.1} parent=1 // pred_check
      _
    $region7: #{imitation_model_forward.1} parent=1 // pred_check_branch
      %20 = sbr.rel (0) target = $region9
    $region8: #{imitation_model_forward.1} parent=1 // pred_region
      %s22 = ssub.s32 64, 64
      %23 = vsyncadd [#allocation3], %s22
      %s25 = sshll.u32 [#allocation2], 4
      %s26 = int_to_ptr.vmem [resolvable:$true] %s25
      %28 = dma.hbm_to_vmem [thread:$0]  %s1, 64, %s26, [#allocation3]
    $region9: #{imitation_model_forward.1} parent=1 // pred_fallthru
      _
    // Predicated region
    $region10: #{imitation_model_forward.1} parent=1 // pred_check
      _
    $region11: #{imitation_model_forward.1} parent=1 // pred_check_branch
      %30 = sbr.rel (0) target = $region13
    $region12: #{imitation_model_forward.1} parent=1 // pred_region
      _
    $region13: #{imitation_model_forward.1} parent=1 // pred_fallthru
      _
    // Predicated region
    $region14: #{imitation_model_forward.1} parent=1 // pred_check
      _
    $region15: #{imitation_model_forward.1} parent=1 // pred_check_branch
      %32 = sbr.rel (0) target = $region17
    $region16: #{imitation_model_forward.1} parent=1 // pred_region
      _
    $region17: #{imitation_model_forward.1} parent=1 // pred_fallthru
      _
    // Predicated region
    $region18: #{imitation_model_forward.1} parent=1 // pred_check
      _
    $region19: #{imitation_model_forward.1} parent=1 // pred_check_branch
      %34 = sbr.rel (0) target = $region21
    $region20: #{imitation_model_forward.1} parent=1 // pred_region
      %s36 = ssub.s32 16, 16
      %37 = vsyncadd [#allocation6], %s36
      %s39 = sshll.u32 [#allocation5], 4
      %s40 = int_to_ptr.vmem [resolvable:$true] %s39
      %42 = dma.hbm_to_vmem [thread:$0]  %s4, 16, %s40, [#allocation6]
    $region21: #{imitation_model_forward.1} parent=1 // pred_fallthru
      _
    // Predicated region
    $region22: #{imitation_model_forward.1} parent=1 // pred_check
      _
    $region23: #{imitation_model_forward.1} parent=1 // pred_check_branch
      %44 = sbr.rel (0) target = $region25
    $region24: #{imitation_model_forward.1} parent=1 // pred_region
      %s46 = ssub.s32 1024, 1024
      %47 = vsyncadd [#allocation6], %s46
      %s48 = sshll.u32 [#allocation7], 4
      %s49 = int_to_ptr.vmem [resolvable:$true] %s48
      %54 = dma.hbm_to_vmem [thread:$0]  %s5, 1024, %s49, [#allocation6], 64, 64, 4
    $region25: #{imitation_model_forward.1} parent=1 // pred_fallthru
      _
    // Predicated region
    $region26: #{imitation_model_forward.1} parent=1 // pred_check
      _
    $region27: #{imitation_model_forward.1} parent=1 // pred_check_branch
      %56 = sbr.rel (0) target = $region29
    $region28: #{imitation_model_forward.1} parent=1 // pred_region
      _
    $region29: #{imitation_model_forward.1} parent=1 // pred_fallthru
      _
    // Predicated region
    $region30: #{imitation_model_forward.1} parent=1 // pred_check
      _
    $region31: #{imitation_model_forward.1} parent=1 // pred_check_branch
      %58 = sbr.rel (0) target = $region33
    $region32: #{imitation_model_forward.1} parent=1 // pred_region
      _
    $region33: #{imitation_model_forward.1} parent=1 // pred_fallthru
      _
    // Predicated region
    $region34: #{imitation_model_forward.1} parent=1 // pred_check
      _
    $region35: #{imitation_model_forward.1} parent=1 // pred_check_branch
      %60 = sbr.rel (0) target = $region37
    $region36: #{imitation_model_forward.1} parent=1 // pred_region
      _
    $region37: #{imitation_model_forward.1} parent=1 // pred_fallthru
      _
    // Predicated region
    $region38: #{imitation_model_forward.1} parent=1 // pred_check
      _
    $region39: #{imitation_model_forward.1} parent=1 // pred_check_branch
      %62 = sbr.rel (0) target = $region41
    $region40: #{imitation_model_forward.1} parent=1 // pred_region
      %63 = dma.done [#allocation3], 64
    $region41: #{imitation_model_forward.1} parent=1 // pred_fallthru
      _
    // Predicated region
    $region42: #{imitation_model_forward.1} parent=1 // pred_check
      _
    $region43: #{imitation_model_forward.1} parent=1 // pred_check_branch
      %65 = sbr.rel (0) target = $region45
    $region44: #{imitation_model_forward.1} parent=1 // pred_region
      %66 = dma.done [#allocation6], 16
    $region45: #{imitation_model_forward.1} parent=1 // pred_fallthru
      _
    // Predicated region
    $region46: #{imitation_model_forward.1} parent=1 // pred_check
      _
    $region47: #{imitation_model_forward.1} parent=1 // pred_check_branch
      %68 = sbr.rel (0) target = $region49
    $region48: #{imitation_model_forward.1} parent=1 // pred_region
      %69 = dma.done [#allocation6], 1024
    $region49: #{imitation_model_forward.1} parent=1 // pred_fallthru
      _
    %v71 = vld [vmem:[%s0] sm:$0xff]
    %v72 = vpack.c.bf16 %v71, %v71
    %v73 = vld [vmem:[#allocation2] sm:$0x7]
    %v74 = vld [vmem:[%s2] sm:$0x1]
    %v76 = vlaneseq
    %v77 = vshrl.u32 %v76, 7
    %v78 = vsub.s32 0, %v77
    %v79 = vrot.slane %v74, %v78
    %vm81 = vcmask 39936
    %v83 = vsel %vm81, %v72, 0
    %vm85 = vcmask 1041408
    %vm86 = vcmask 1042432
    %v87 = vsel %vm85, 4294967295, 65535
    %v88 = vsel %vm86, %v87, 0
    %v90 = vand.u32 %v73, %v88
    %92 = vmatprep.subr.bf16.mxu0 0
    %93 = vmatpush1.bf16.msra.mxu0 0
    %94 = vmatprep.subr.bf16.mxu0 0
    %95 = vmatpush1.bf16.msra.mxu0 0
    %96 = vmatprep.subr.bf16.mxu0 0
    %97 = vmatpush1.bf16.msra.mxu0 0
    %98 = vmatprep.subr.bf16.mxu0 0
    %99 = vmatpush1.bf16.msra.mxu0 0
    %100 = vmatprep.subr.bf16.mxu0 0
    %101 = vmatpush1.bf16.msra.mxu0 0
    %102 = vmatprep.subr.bf16.mxu0 0
    %103 = vmatpush1.bf16.msra.mxu0 0
    %104 = vmatprep.subr.bf16.mxu0 0
    %105 = vmatpush1.bf16.msra.mxu0 0
    %106 = vmatprep.subr.bf16.mxu0 0
    %107 = vmatpush1.bf16.msra.mxu0 %v90
    %108 = vmatprep.subr.bf16.mxu0 0
    %109 = vmatpush2.bf16.msra.mxu0 0
    %110 = vmatprep.subr.bf16.mxu0 0
    %111 = vmatpush2.bf16.msra.mxu0 0
    %112 = vmatprep.subr.bf16.mxu0 0
    %113 = vmatpush2.bf16.msra.mxu0 0
    %114 = vmatprep.subr.bf16.mxu0 0
    %115 = vmatpush2.bf16.msra.mxu0 0
    %116 = vmatprep.subr.bf16.mxu0 0
    %117 = vmatpush2.bf16.msra.mxu0 0
    %118 = vmatprep.subr.bf16.mxu0 0
    %119 = vmatpush2.bf16.msra.mxu0 0
    %120 = vmatprep.subr.bf16.mxu0 0
    %121 = vmatpush2.bf16.msra.mxu0 0
    %122 = vmatprep.subr.bf16.mxu0 0
    %123 = vmatpush2.bf16.msra.mxu0 0
    %124 = vmatprep.mubr.bf16.mxu0 0
    %125 = vmatmul.mubr.bf16.gmra.mxu0 %v83
    %v126 = vpop.f32.mrf.mxu0
    %v127 = vadd.f32 %v79, %v126
    %v128 = vpop.f32.mrf.mxu0
    %v129 = vpop.f32.mrf.mxu0
    %v130 = vpop.f32.mrf.mxu0
    %131 = vdwg.mxu0
    %v132 = vmax.f32 %v127, 0.0
    %v133 = vpack.c.bf16 %v132, %v132
    %v134 = vld [vmem:[%s3] sm:$0xf]
    %v135 = vld [vmem:[%s3 + $0x4] sm:$0xf]
    %v136 = vld [vmem:[%s3 + $0x8] sm:$0xf]
    %v137 = vld [vmem:[%s3 + $0xc] sm:$0xf]
    %v138 = vld [vmem:[%s3 + $0x10] sm:$0xf]
    %v139 = vld [vmem:[%s3 + $0x14] sm:$0xf]
    %v140 = vld [vmem:[%s3 + $0x18] sm:$0xf]
    %v141 = vld [vmem:[%s3 + $0x1c] sm:$0xf]
    %v142 = vld [vmem:[%s3 + $0x20] sm:$0xf]
    %v143 = vld [vmem:[%s3 + $0x24] sm:$0xf]
    %v144 = vld [vmem:[%s3 + $0x28] sm:$0xf]
    %v145 = vld [vmem:[%s3 + $0x2c] sm:$0xf]
    %v146 = vld [vmem:[%s3 + $0x30] sm:$0xf]
    %v147 = vld [vmem:[%s3 + $0x34] sm:$0xf]
    %v148 = vld [vmem:[%s3 + $0x38] sm:$0xf]
    %v149 = vld [vmem:[%s3 + $0x3c] sm:$0xf]
    %v150 = vld [vmem:[#allocation5] sm:$0x1]
    %v152 = vlaneseq
    %v153 = vshrl.u32 %v152, 7
    %v154 = vsub.s32 0, %v153
    %v155 = vrot.slane %v150, %v154
    %v173 = vunpack.c.l.b16 %v134
    %v174 = vunpack.c.l.b16 %v135
    %v175 = vunpack.c.l.b16 %v136
    %v176 = vunpack.c.l.b16 %v137
    %v177 = vunpack.c.l.b16 %v138
    %v178 = vunpack.c.l.b16 %v139
    %v179 = vunpack.c.l.b16 %v140
    %v180 = vunpack.c.l.b16 %v141
    %v181 = vunpack.c.l.b16 %v142
    %v182 = vunpack.c.l.b16 %v143
    %v183 = vunpack.c.l.b16 %v144
    %v184 = vunpack.c.l.b16 %v145
    %v185 = vunpack.c.l.b16 %v146
    %v186 = vunpack.c.l.b16 %v147
    %v187 = vunpack.c.l.b16 %v148
    %v188 = vunpack.c.l.b16 %v149
    %v189 = vpack.c.b16 %v174, %v173
    %v190 = vpack.c.b16 %v176, %v175
    %v191 = vpack.c.b16 %v178, %v177
    %v192 = vpack.c.b16 %v180, %v179
    %v193 = vpack.c.b16 %v182, %v181
    %v194 = vpack.c.b16 %v184, %v183
    %v195 = vpack.c.b16 %v186, %v185
    %v196 = vpack.c.b16 %v188, %v187
    %205 = vmatprep.subr.bf16.mxu0 0
    %206 = vmatpush1.bf16.msra.mxu0 %v196
    %207 = vmatprep.subr.bf16.mxu0 0
    %208 = vmatpush1.bf16.msra.mxu0 %v195
    %209 = vmatprep.subr.bf16.mxu0 0
    %210 = vmatpush1.bf16.msra.mxu0 %v194
    %211 = vmatprep.subr.bf16.mxu0 0
    %212 = vmatpush1.bf16.msra.mxu0 %v193
    %213 = vmatprep.subr.bf16.mxu0 0
    %214 = vmatpush1.bf16.msra.mxu0 %v192
    %215 = vmatprep.subr.bf16.mxu0 0
    %216 = vmatpush1.bf16.msra.mxu0 %v191
    %217 = vmatprep.subr.bf16.mxu0 0
    %218 = vmatpush1.bf16.msra.mxu0 %v190
    %219 = vmatprep.subr.bf16.mxu0 0
    %220 = vmatpush1.bf16.msra.mxu0 %v189
    %221 = vmatprep.subr.bf16.mxu0 0
    %222 = vmatpush2.bf16.msra.mxu0 0
    %223 = vmatprep.subr.bf16.mxu0 0
    %224 = vmatpush2.bf16.msra.mxu0 0
    %225 = vmatprep.subr.bf16.mxu0 0
    %226 = vmatpush2.bf16.msra.mxu0 0
    %227 = vmatprep.subr.bf16.mxu0 0
    %228 = vmatpush2.bf16.msra.mxu0 0
    %229 = vmatprep.subr.bf16.mxu0 0
    %230 = vmatpush2.bf16.msra.mxu0 0
    %231 = vmatprep.subr.bf16.mxu0 0
    %232 = vmatpush2.bf16.msra.mxu0 0
    %233 = vmatprep.subr.bf16.mxu0 0
    %234 = vmatpush2.bf16.msra.mxu0 0
    %235 = vmatprep.subr.bf16.mxu0 0
    %236 = vmatpush2.bf16.msra.mxu0 0
    %237 = vmatprep.mubr.bf16.mxu0 0
    %238 = vmatmul.mubr.bf16.gmra.mxu0 %v133
    %v239 = vpop.f32.mrf.mxu0
    %v240 = vadd.f32 %v155, %v239
    %v241 = vpop.f32.mrf.mxu0
    %v242 = vpop.f32.mrf.mxu0
    %v243 = vpop.f32.mrf.mxu0
    %244 = vdwg.mxu0
    %v245 = vmax.f32 %v240, 0.0
    %v246 = vpack.c.bf16 %v245, %v245
    %v247 = vld [vmem:[#allocation7] sm:$0xf]
    %v248 = vld [vmem:[#allocation7 + $0x4] sm:$0xf]
    %v249 = vld [vmem:[#allocation7 + $0x8] sm:$0xf]
    %v250 = vld [vmem:[#allocation7 + $0xc] sm:$0xf]
    %v251 = vld [vmem:[#allocation7 + $0x10] sm:$0xf]
    %v252 = vld [vmem:[#allocation7 + $0x14] sm:$0xf]
    %v253 = vld [vmem:[#allocation7 + $0x18] sm:$0xf]
    %v254 = vld [vmem:[#allocation7 + $0x1c] sm:$0xf]
    %v255 = vld [vmem:[#allocation7 + $0x20] sm:$0xf]
    %v256 = vld [vmem:[#allocation7 + $0x24] sm:$0xf]
    %v257 = vld [vmem:[#allocation7 + $0x28] sm:$0xf]
    %v258 = vld [vmem:[#allocation7 + $0x2c] sm:$0xf]
    %v259 = vld [vmem:[#allocation7 + $0x30] sm:$0xf]
    %v260 = vld [vmem:[#allocation7 + $0x34] sm:$0xf]
    %v261 = vld [vmem:[#allocation7 + $0x38] sm:$0xf]
    %v262 = vld [vmem:[#allocation7 + $0x3c] sm:$0xf]
    %v263 = vld [vmem:[%s6] sm:$0x1]
    %v265 = vlaneseq
    %v266 = vshrl.u32 %v265, 7
    %v267 = vsub.s32 0, %v266
    %v268 = vrot.slane %v263, %v267
    %v286 = vunpack.c.l.b16 %v247
    %v287 = vunpack.c.l.b16 %v248
    %v288 = vunpack.c.l.b16 %v249
    %v289 = vunpack.c.l.b16 %v250
    %v290 = vunpack.c.l.b16 %v251
    %v291 = vunpack.c.l.b16 %v252
    %v292 = vunpack.c.l.b16 %v253
    %v293 = vunpack.c.l.b16 %v254
    %v294 = vunpack.c.l.b16 %v255
    %v295 = vunpack.c.l.b16 %v256
    %v296 = vunpack.c.l.b16 %v257
    %v297 = vunpack.c.l.b16 %v258
    %v298 = vunpack.c.l.b16 %v259
    %v299 = vunpack.c.l.b16 %v260
    %v300 = vunpack.c.l.b16 %v261
    %v301 = vunpack.c.l.b16 %v262
    %v302 = vpack.c.b16 %v287, %v286
    %v303 = vpack.c.b16 %v289, %v288
    %v304 = vpack.c.b16 %v291, %v290
    %v305 = vpack.c.b16 %v293, %v292
    %v306 = vpack.c.b16 %v295, %v294
    %v307 = vpack.c.b16 %v297, %v296
    %v308 = vpack.c.b16 %v299, %v298
    %v309 = vpack.c.b16 %v301, %v300
    %318 = vmatprep.subr.bf16.mxu0 0
    %319 = vmatpush1.bf16.msra.mxu0 %v309
    %320 = vmatprep.subr.bf16.mxu0 0
    %321 = vmatpush1.bf16.msra.mxu0 %v308
    %322 = vmatprep.subr.bf16.mxu0 0
    %323 = vmatpush1.bf16.msra.mxu0 %v307
    %324 = vmatprep.subr.bf16.mxu0 0
    %325 = vmatpush1.bf16.msra.mxu0 %v306
    %326 = vmatprep.subr.bf16.mxu0 0
    %327 = vmatpush1.bf16.msra.mxu0 %v305
    %328 = vmatprep.subr.bf16.mxu0 0
    %329 = vmatpush1.bf16.msra.mxu0 %v304
    %330 = vmatprep.subr.bf16.mxu0 0
    %331 = vmatpush1.bf16.msra.mxu0 %v303
    %332 = vmatprep.subr.bf16.mxu0 0
    %333 = vmatpush1.bf16.msra.mxu0 %v302
    %334 = vmatprep.subr.bf16.mxu0 0
    %335 = vmatpush2.bf16.msra.mxu0 0
    %336 = vmatprep.subr.bf16.mxu0 0
    %337 = vmatpush2.bf16.msra.mxu0 0
    %338 = vmatprep.subr.bf16.mxu0 0
    %339 = vmatpush2.bf16.msra.mxu0 0
    %340 = vmatprep.subr.bf16.mxu0 0
    %341 = vmatpush2.bf16.msra.mxu0 0
    %342 = vmatprep.subr.bf16.mxu0 0
    %343 = vmatpush2.bf16.msra.mxu0 0
    %344 = vmatprep.subr.bf16.mxu0 0
    %345 = vmatpush2.bf16.msra.mxu0 0
    %346 = vmatprep.subr.bf16.mxu0 0
    %347 = vmatpush2.bf16.msra.mxu0 0
    %348 = vmatprep.subr.bf16.mxu0 0
    %349 = vmatpush2.bf16.msra.mxu0 0
    %350 = vmatprep.mubr.bf16.mxu0 0
    %351 = vmatmul.mubr.bf16.gmra.mxu0 %v246
    %v352 = vpop.f32.mrf.mxu0
    %v353 = vadd.f32 %v268, %v352
    %v354 = vpop.f32.mrf.mxu0
    %v355 = vpop.f32.mrf.mxu0
    %v356 = vpop.f32.mrf.mxu0
    %357 = vdwg.mxu0
    %v358 = vmax.f32 %v353, 0.0
    %v359 = vpack.c.bf16 %v358, %v358
    %v360 = vld [vmem:[%s7] sm:$0xf]
    %v361 = vld [vmem:[%s7 + $0x4] sm:$0xf]
    %v362 = vld [vmem:[%s7 + $0x8] sm:$0xf]
    %v363 = vld [vmem:[%s7 + $0xc] sm:$0xf]
    %v364 = vld [vmem:[%s7 + $0x10] sm:$0xf]
    %v365 = vld [vmem:[%s7 + $0x14] sm:$0xf]
    %v366 = vld [vmem:[%s7 + $0x18] sm:$0xf]
    %v367 = vld [vmem:[%s7 + $0x1c] sm:$0xf]
    %v368 = vld [vmem:[%s7 + $0x20] sm:$0xf]
    %v369 = vld [vmem:[%s7 + $0x24] sm:$0xf]
    %v370 = vld [vmem:[%s7 + $0x28] sm:$0xf]
    %v371 = vld [vmem:[%s7 + $0x2c] sm:$0xf]
    %v372 = vld [vmem:[%s7 + $0x30] sm:$0xf]
    %v373 = vld [vmem:[%s7 + $0x34] sm:$0xf]
    %v374 = vld [vmem:[%s7 + $0x38] sm:$0xf]
    %v375 = vld [vmem:[%s7 + $0x3c] sm:$0xf]
    %v376 = vld [vmem:[%s8] sm:$0x1]
    %v378 = vlaneseq
    %v379 = vshrl.u32 %v378, 7
    %v380 = vsub.s32 0, %v379
    %v381 = vrot.slane %v376, %v380
    %v399 = vunpack.c.l.b16 %v360
    %v400 = vunpack.c.l.b16 %v361
    %v401 = vunpack.c.l.b16 %v362
    %v402 = vunpack.c.l.b16 %v363
    %v403 = vunpack.c.l.b16 %v364
    %v404 = vunpack.c.l.b16 %v365
    %v405 = vunpack.c.l.b16 %v366
    %v406 = vunpack.c.l.b16 %v367
    %v407 = vunpack.c.l.b16 %v368
    %v408 = vunpack.c.l.b16 %v369
    %v409 = vunpack.c.l.b16 %v370
    %v410 = vunpack.c.l.b16 %v371
    %v411 = vunpack.c.l.b16 %v372
    %v412 = vunpack.c.l.b16 %v373
    %v413 = vunpack.c.l.b16 %v374
    %v414 = vunpack.c.l.b16 %v375
    %v415 = vpack.c.b16 %v400, %v399
    %v416 = vpack.c.b16 %v402, %v401
    %v417 = vpack.c.b16 %v404, %v403
    %v418 = vpack.c.b16 %v406, %v405
    %v419 = vpack.c.b16 %v408, %v407
    %v420 = vpack.c.b16 %v410, %v409
    %v421 = vpack.c.b16 %v412, %v411
    %v422 = vpack.c.b16 %v414, %v413
    %431 = vmatprep.subr.bf16.mxu0 0
    %432 = vmatpush1.bf16.msra.mxu0 %v422
    %433 = vmatprep.subr.bf16.mxu0 0
    %434 = vmatpush1.bf16.msra.mxu0 %v421
    %435 = vmatprep.subr.bf16.mxu0 0
    %436 = vmatpush1.bf16.msra.mxu0 %v420
    %437 = vmatprep.subr.bf16.mxu0 0
    %438 = vmatpush1.bf16.msra.mxu0 %v419
    %439 = vmatprep.subr.bf16.mxu0 0
    %440 = vmatpush1.bf16.msra.mxu0 %v418
    %441 = vmatprep.subr.bf16.mxu0 0
    %442 = vmatpush1.bf16.msra.mxu0 %v417
    %443 = vmatprep.subr.bf16.mxu0 0
    %444 = vmatpush1.bf16.msra.mxu0 %v416
    %445 = vmatprep.subr.bf16.mxu0 0
    %446 = vmatpush1.bf16.msra.mxu0 %v415
    %447 = vmatprep.subr.bf16.mxu0 0
    %448 = vmatpush2.bf16.msra.mxu0 0
    %449 = vmatprep.subr.bf16.mxu0 0
    %450 = vmatpush2.bf16.msra.mxu0 0
    %451 = vmatprep.subr.bf16.mxu0 0
    %452 = vmatpush2.bf16.msra.mxu0 0
    %453 = vmatprep.subr.bf16.mxu0 0
    %454 = vmatpush2.bf16.msra.mxu0 0
    %455 = vmatprep.subr.bf16.mxu0 0
    %456 = vmatpush2.bf16.msra.mxu0 0
    %457 = vmatprep.subr.bf16.mxu0 0
    %458 = vmatpush2.bf16.msra.mxu0 0
    %459 = vmatprep.subr.bf16.mxu0 0
    %460 = vmatpush2.bf16.msra.mxu0 0
    %461 = vmatprep.subr.bf16.mxu0 0
    %462 = vmatpush2.bf16.msra.mxu0 0
    %463 = vmatprep.mubr.bf16.mxu0 0
    %464 = vmatmul.mubr.bf16.gmra.mxu0 %v359
    %v465 = vpop.f32.mrf.mxu0
    %v466 = vadd.f32 %v381, %v465
    %v467 = vpop.f32.mrf.mxu0
    %v468 = vpop.f32.mrf.mxu0
    %v469 = vpop.f32.mrf.mxu0
    %470 = vdwg.mxu0
    %471 = vst.msk [vmem:[#allocation8] sm:$0xff] %vm81, %v466
    // Predicated region
    $region50: #{imitation_model_forward.1} parent=1 // pred_check
      _
    $region51: #{imitation_model_forward.1} parent=1 // pred_check_branch
      %473 = sbr.rel (0) target = $region53
    $region52: #{imitation_model_forward.1} parent=1 // pred_region
      %s475 = ssub.s32 128, 128
      %476 = vsyncadd [#allocation4], %s475
      %s478 = sshll.u32 [#allocation8], 4
      %s479 = int_to_ptr.vmem [resolvable:$true] %s478
      %481 = dma.vmem_to_hbm [thread:$0]  %s479, 128, %s9, [#allocation4]
    $region53: #{imitation_model_forward.1} parent=1 // pred_fallthru
      _
    // Predicated region
    $region54: #{imitation_model_forward.1} parent=1 // pred_check
      _
    $region55: #{imitation_model_forward.1} parent=1 // pred_check_branch
      %483 = sbr.rel (0) target = $region57
    $region56: #{imitation_model_forward.1} parent=1 // pred_region
      %484 = dma.done [#allocation4], 128
    $region57: #{imitation_model_forward.1} parent=1 // pred_fallthru
      _
    %485 = vsyncpa [#allocation3], 1
    %486 = vsyncpa [#allocation6], 1
    %487 = vsyncpa [#allocation4], 1

</llo_original>
